<compile_context>
chip_gen: v7x
topology: tpu7x:2x2x1
jax: 0.10.0
libtpu: 0.0.40
codegen_flags: <defaults>
</compile_context>

<pallas_src>
import math
from functools import partial

import jax
import jax.numpy as jnp
from jax.experimental import pallas as pl
from jax.experimental.pallas import tpu as pltpu


# ----------------------------- Pallas kernel ------------------------------- #

def dist_emb_kernel(dist_ref, freq_ref, out_ref, *, inv_cutoff, p, a, b, c):
    # dist_ref: (1, TE)      scaled edge distances tile (lanes = edges)
    # freq_ref: (R_pad, 1)   radial frequencies (sublanes = radial index)
    # out_ref : (R_pad, TE)  transposed radial embedding tile
    x = dist_ref[...] * inv_cutoff                                  # (1, TE)

    # envelope(x) = 1/x + a*x^(p-1) + b*x^p + c*x^(p+1)  (p static -> unrolled muls)
    x_pow_p0 = x
    for _ in range(p - 2):                                          # -> x^(p-1)
        x_pow_p0 = x_pow_p0 * x
    x_pow_p1 = x_pow_p0 * x                                         # x^p
    x_pow_p2 = x_pow_p1 * x                                         # x^(p+1)
    env = 1.0 / x + a * x_pow_p0 + b * x_pow_p1 + c * x_pow_p2      # (1, TE)

    arg = freq_ref[...] * x                                         # (R_pad, TE)
    out_ref[...] = env * jnp.sin(arg)                               # broadcast rows


# ------------------------------- wrapper ------------------------------------ #

def dist_emb_forward(dist, freq, *, cutoff=5.0, envelope_exponent=5,
                     edge_tile=128):
    """dist: [E] f32 edge distances, freq: [num_radial] f32 frequencies."""
    E = dist.shape[0]
    R = freq.shape[0]
    p = envelope_exponent + 1
    a = -(p + 1) * (p + 2) / 2.0
    b = float(p * (p + 2))
    c = -p * (p + 1) / 2.0

    E_pad = ((E + edge_tile - 1) // edge_tile) * edge_tile          # lane-aligned
    R_pad = ((R + 7) // 8) * 8                                      # sublane-aligned

    # Pad distances with 1.0 (avoids 1/0 in the envelope on padded lanes).
    dist_p = jnp.pad(dist.astype(jnp.float32), (0, E_pad - E),
                     constant_values=1.0).reshape(1, E_pad)
    freq_p = jnp.pad(freq.astype(jnp.float32), (0, R_pad - R)).reshape(R_pad, 1)

    kernel = partial(dist_emb_kernel, inv_cutoff=1.0 / cutoff, p=p, a=a, b=b, c=c)

    out_t = pl.pallas_call(
        kernel,
        out_shape=jax.ShapeDtypeStruct((R_pad, E_pad), jnp.float32),
        grid=(E_pad // edge_tile,),
        in_specs=[
            pl.BlockSpec((1, edge_tile), lambda i: (0, i)),          # dist tile
            pl.BlockSpec((R_pad, 1), lambda i: (0, 0)),              # freq (small)
        ],
        out_specs=pl.BlockSpec((R_pad, edge_tile), lambda i: (0, i)),
        compiler_params=pltpu.CompilerParams(
            dimension_semantics=("parallel",),
            vmem_limit_bytes=32 * 1024 * 1024,
        ),
    )(dist_p, freq_p)

    # Layout plumbing back to PyTorch's [num_edges, num_radial].
    return out_t.T[:E, :R]


# ------------------------------ reference (JAX) ----------------------------- #

def reference_forward(dist, freq, cutoff, envelope_exponent):
    p = envelope_exponent + 1
    a = -(p + 1) * (p + 2) / 2.0
    b = float(p * (p + 2))
    c = -p * (p + 1) / 2.0
    x = (dist / cutoff)[:, None]
    env = 1.0 / x + a * x ** (p - 1) + b * x ** p + c * x ** (p + 1)
    return env * jnp.sin(freq[None, :] * x)


# ---------------------------------- main ------------------------------------ #

if __name__ == "__main__":
    num_radial = 6
    cutoff = 5.0
    envelope_exponent = 5
    num_edges = 16

    key = jax.random.PRNGKey(0)
    dist = jax.random.uniform(key, (num_edges,), jnp.float32,
                              minval=0.1, maxval=cutoff)
    # reset_parameters(): freq = arange(1, num_radial+1) * pi
    freq = jnp.arange(1, num_radial + 1, dtype=jnp.float32) * math.pi

    out = dist_emb_forward(dist, freq, cutoff=cutoff,
                           envelope_exponent=envelope_exponent)
    out = jax.block_until_ready(out)

    ref = reference_forward(dist, freq, cutoff, envelope_exponent)
    assert out.shape == (num_edges, num_radial)
    assert jnp.allclose(out, ref, atol=1e-4, rtol=1e-4), \
        float(jnp.max(jnp.abs(out - ref)))

    print("KERNEL_OK")
</pallas_src>

<mosaic_0001>
module attributes {stable_mosaic.version = 11 : i64} {
  func.func @dist_emb_kernel(%arg0: i32, %arg1: memref<1x128xf32, #tpu.memory_space<vmem>>, %arg2: memref<8x1xf32, #tpu.memory_space<vmem>>, %arg3: memref<8x128xf32, #tpu.memory_space<vmem>>) attributes {dimension_semantics = [#tpu.dimension_semantics<parallel>], iteration_bounds = array<i64: 1>, scalar_prefetch = 0 : i64, scratch_operands = 0 : i64, tpu.core_type = #tpu.core_type<tc>, window_params = [{transform_indices = @transform_0, window_bounds = array<i64: 1, 128>}, {pipeline_mode = #tpu.pipeline_mode<synchronous>, transform_indices = @transform_1, window_bounds = array<i64: 8, 1>}, {transform_indices = @transform_2, window_bounds = array<i64: 8, 128>}]} {
    %c0 = arith.constant 0 : index
    %c0_0 = arith.constant 0 : index
    %0 = vector.load %arg1[%c0, %c0_0] : memref<1x128xf32, #tpu.memory_space<vmem>>, vector<1x128xf32>
    %cst = arith.constant 2.000000e-01 : f32
    %1 = vector.broadcast %cst : f32 to vector<1x128xf32>
    %2 = arith.mulf %0, %1 : vector<1x128xf32>
    %3 = arith.mulf %2, %2 : vector<1x128xf32>
    %4 = arith.mulf %3, %2 : vector<1x128xf32>
    %5 = arith.mulf %4, %2 : vector<1x128xf32>
    %6 = arith.mulf %5, %2 : vector<1x128xf32>
    %7 = arith.mulf %6, %2 : vector<1x128xf32>
    %8 = arith.mulf %7, %2 : vector<1x128xf32>
    %cst_1 = arith.constant 1.000000e+00 : f32
    %9 = vector.broadcast %cst_1 : f32 to vector<1x128xf32>
    %10 = arith.divf %9, %2 : vector<1x128xf32>
    %cst_2 = arith.constant -2.800000e+01 : f32
    %11 = vector.broadcast %cst_2 : f32 to vector<1x128xf32>
    %12 = arith.mulf %11, %6 : vector<1x128xf32>
    %13 = arith.addf %10, %12 : vector<1x128xf32>
    %cst_3 = arith.constant 4.800000e+01 : f32
    %14 = vector.broadcast %cst_3 : f32 to vector<1x128xf32>
    %15 = arith.mulf %14, %7 : vector<1x128xf32>
    %16 = arith.addf %13, %15 : vector<1x128xf32>
    %cst_4 = arith.constant -2.100000e+01 : f32
    %17 = vector.broadcast %cst_4 : f32 to vector<1x128xf32>
    %18 = arith.mulf %17, %8 : vector<1x128xf32>
    %19 = arith.addf %16, %18 : vector<1x128xf32>
    %c0_5 = arith.constant 0 : index
    %c0_6 = arith.constant 0 : index
    %20 = vector.load %arg2[%c0_5, %c0_6] : memref<8x1xf32, #tpu.memory_space<vmem>>, vector<8x1xf32>
    %21 = vector.broadcast %20 : vector<8x1xf32> to vector<8x128xf32>
    %22 = vector.broadcast %2 : vector<1x128xf32> to vector<8x128xf32>
    %23 = arith.mulf %21, %22 : vector<8x128xf32>
    %24 = math.sin %23 : vector<8x128xf32>
    %25 = vector.broadcast %19 : vector<1x128xf32> to vector<8x128xf32>
    %26 = arith.mulf %25, %24 : vector<8x128xf32>
    %c0_7 = arith.constant 0 : index
    %c0_8 = arith.constant 0 : index
    %27 = vector.load %arg3[%c0_7, %c0_8] : memref<8x128xf32, #tpu.memory_space<vmem>>, vector<8x128xf32>
    tpu.vector_store %arg3[%c0_7, %c0_8], %26 {strides = array<i32>} : memref<8x128xf32, #tpu.memory_space<vmem>>, vector<8x128xf32>,
    return
  }
  func.func @transform_0(%arg0: i32) -> (i32, i32) {
    %c0_i32 = arith.constant 0 : i32
    %c0_i32_0 = arith.constant 0 : i32
    return %c0_i32, %arg0 : i32, i32
  }
  func.func @transform_1(%arg0: i32) -> (i32, i32) {
    %c0_i32 = arith.constant 0 : i32
    %c0_i32_0 = arith.constant 0 : i32
    %c0_i32_1 = arith.constant 0 : i32
    return %c0_i32, %c0_i32_0 : i32, i32
  }
  func.func @transform_2(%arg0: i32) -> (i32, i32) {
    %c0_i32 = arith.constant 0 : i32
    %c0_i32_0 = arith.constant 0 : i32
    return %c0_i32, %arg0 : i32, i32
  }
}

</mosaic_0001>

<llo_original>
// kernel: tpu_custom_call.1
$region0: #{tpu_custom_call.1}
  #allocation0 [shape = 'u32[]', space=smem, size = 0x4, offset = 0x4, fixed_abs, tag = 'smem constant byte address 0x4 - core index']
  #allocation1 [shape = 'u32[144,128]{1,0:T(1,128)}', space=vmem, size = 0x12000, scoped, tag = 'internal scratch']
  %s0 = inlined_call_operand.vmem [shape: f32[1,128], index: 0, kind: input, shape index: {}]
  %s1 = inlined_call_operand.vmem [shape: f32[8,1], index: 1, kind: input, shape index: {}]
  %s2 = inlined_call_operand.hbm [shape: f32[8,128], index: 2, kind: output, shape index: {}]
  %s3 = sld [smem:[#allocation0]]
  $region18: #{tpu_custom_call.1} parent=0
    _
  %s5 = ssub.s32 1, %s3
  %s6 = scalar_select 0, %s5, %s3
  $region1: #{tpu_custom_call.1} parent=0
    #allocation2 [shape = 'u8[4096]{0}', space=vmem, size = 0x1000, scoped, tag = 'output window, operand 0, single buffered']
    #allocation3 [shape = 's32[1]{0}', space=sflag, size = 0x4, scoped, tag = 'scoped memory for tpu_custom_call.1']
    %7 = vsyncpa [#allocation3], 0
    // Predicated region
    $region2: #{tpu_custom_call.1} parent=1 // pred_check
      _
    $region3: #{tpu_custom_call.1} parent=1 // pred_check_branch
      %9 = sbr.rel (0) target = $region5
    $region4: #{tpu_custom_call.1} parent=1 // pred_region
      _
    $region5: #{tpu_custom_call.1} parent=1 // pred_fallthru
      _
    // Predicated region
    $region6: #{tpu_custom_call.1} parent=1 // pred_check
      _
    $region7: #{tpu_custom_call.1} parent=1 // pred_check_branch
      %11 = sbr.rel (0) target = $region9
    $region8: #{tpu_custom_call.1} parent=1 // pred_region
      _
    $region9: #{tpu_custom_call.1} parent=1 // pred_fallthru
      _
    %v12 = vld [vmem:[%s0] sm:$0x1]
    %v13 = vmul.f32 %v12, 0.2
    %v14 = vmul.f32 %v13, %v13
    %v15 = vmul.f32 %v14, %v13
    %v16 = vmul.f32 %v15, %v13
    %v17 = vmul.f32 %v16, %v13
    %v18 = vmul.f32 %v17, %v13
    %v19 = vmul.f32 %v18, %v13
    %v20 = vrcp.pop %v13
    %v21 = vmul.f32 1.0, %v20
    %v22 = vmul.f32 %v17, -28.0
    %v23 = vadd.f32 %v21, %v22
    %v24 = vmul.f32 %v18, 48.0
    %v25 = vadd.f32 %v23, %v24
    %v26 = vmul.f32 %v19, -21.0
    %v27 = vadd.f32 %v25, %v26
    %v28 = vld [vmem:[%s1] sm:$0xff]
    %30 = vset.pattern.permute.xlu0 0
    %31 = vperm.xlu0 %30, %v28
    %v32 = vpop.permute.xlu0 %31
    %v35 = vlaneseq
    %v36 = vshrl.u32 %v35, 7
    %v37 = vsub.s32 0, %v36
    %v38 = vrot.slane %v13, %v37
    %v40 = vmul.f32 %v32, %v38
    %v41 = vand.u32 2147483647, %v40
    %vm42 = vcmp.le.f32.partialorder %v41, 0.7853982
    %vm43 = vcmp.lt.s32.totalorder %v40, 0
    %v44 = vand.u32 %v40, 2139095040
    %v45 = vshrl.u32 %v44, 23
    %v46 = vsub.s32 %v45, 127
    %v47 = vand.u32 2147483647, %v40
    %v48 = vand.u32 %v47, 8388607
    %v49 = vor.u32 %v48, 8388608
    %v50 = vsub.s32 0, %v49
    %v51 = vadd.s32 %v46, 1
    %vm52 = vcmp.gt.s32.totalorder %v51, 0
    %v53 = vsel %vm52, %v51, 0
    %v54 = vshrl.u32 %v53, 5
    %v55 = vand.u32 %v53, 31
    %v56 = vsub.s32 32, %v55
    %v57 = vshrl.u32 683565275, %v56
    %v58 = vshll.u32 683565275, %v55
    %v59 = vshrl.u32 2475754826, %v56
    %v60 = vor.u32 %v58, %v59
    %v61 = vshll.u32 2475754826, %v55
    %v62 = vshrl.u32 2131351028, %v56
    %v63 = vor.u32 %v61, %v62
    %v64 = vshll.u32 2131351028, %v55
    %v65 = vshrl.u32 2102212464, %v56
    %v66 = vor.u32 %v64, %v65
    %v67 = vshll.u32 2102212464, %v55
    %v68 = vshrl.u32 920167782, %v56
    %v69 = vor.u32 %v67, %v68
    %v70 = vshll.u32 920167782, %v55
    %v71 = vshrl.u32 1326507024, %v56
    %v72 = vor.u32 %v70, %v71
    %vm73 = vcmp.lt.s32.totalorder %v54, 1
    %vm74 = vcmp.lt.s32.totalorder %v54, 2
    %vm75 = vcmp.lt.s32.totalorder %v54, 3
    %vm76 = vcmp.lt.s32.totalorder %v54, 4
    %v77 = vsel %vm73, %v57, %v60
    %v78 = vsel %vm76, %v66, 2102212464
    %v79 = vsel %vm75, %v63, %v78
    %v80 = vsel %vm74, %v77, %v79
    %v81 = vsel %vm73, %v60, %v63
    %v82 = vsel %vm76, %v69, 920167782
    %v83 = vsel %vm75, %v66, %v82
    %v84 = vsel %vm74, %v81, %v83
    %v85 = vsel %vm73, %v63, %v66
    %v86 = vsel %vm76, %v72, 1326507024
    %v87 = vsel %vm75, %v69, %v86
    %v88 = vsel %vm74, %v85, %v87
    %v89 = vshll.u32 %v49, 8
    %v90 = vmul.u32.u64.compose %v89, %v88
    %v91 = vextract.low.u32 %v90
    %v92 = vextract.high.u32 %v90
    %v93 = vmul.u32.u64.compose %v89, %v84
    %v94 = vextract.low.u32 %v93
    %v95 = vextract.high.u32 %v93
    %v96 = vmul.u32 %v89, %v80
    %v97 = vadd.s32 %v92, %v94
    %vm98 = vc.u32 %v92, %v94
    %v99 = vadd.s32 %v95, 1
    %v100 = vsel %vm98, %v99, %v95
    %v101 = vadd.s32 %v96, %v100
    %v102 = vadd.s32 %v101, 536870912
    %v103 = vshrl.u32 %v102, 30
    %v104 = vshll.u32 %v103, 30
    %v105 = vsub.s32 %v101, %v104
    %vm106 = vcmp.lt.s32.totalorder %v105, 0
    %v107 = vsub.s32 0, %v105
    %v108 = vsel %vm106, %v107, %v105
    %v109 = vclz %v108
    %v110 = vsub.s32 %v109, 2
    %vm111 = vcmp.gt.s32.totalorder 0, %v110
    %v112 = vsel %vm111, 0, %v110
    %v113 = vsub.s32 32, %v112
    %v114 = vshll.u32 %v105, %v112
    %v115 = vshrl.u32 %v97, %v113
    %v116 = vor.u32 %v114, %v115
    %v117 = vsub.s32 4294967266, %v112
    %v118 = vadd.s32 %v117, 127
    %v119 = vshll.u32 %v118, 23
    %v120 = vor.u32 4788187, %v119
    %v121 = vand.u32 2147483647, %v120
    %v123 = vcvt.s32.f32 %v116
    %v124 = vmul.f32 %v123, %v121
    %v125 = vxor.u32 %v124, 2147483648
    %v126 = vsel %vm43, %v125, %v124
    %v127 = vsub.s32 4, %v103
    %v128 = vsel %vm43, %v127, %v103
    %v129 = vsel %vm42, %v40, %v126
    %v130 = vsel %vm42, 0, %v128
    %v131 = vcosq.f32.pop %v129
    %v132 = vsinq.f32.pop %v129
    %vm133 = vweird.f32 %v40
    %v134 = vadd.s32 %v130, 3
    %v135 = vand.u32 %v134, 3
    %vm136 = vcmp.lt.s32.totalorder %v135, 2
    %vm137 = vcmp.eq.s32.totalorder %v135, 0
    %v138 = vxor.u32 %v132, 2147483648
    %v139 = vsel %vm137, %v131, %v138
    %vm140 = vcmp.eq.s32.totalorder %v135, 2
    %v141 = vxor.u32 %v131, 2147483648
    %v142 = vsel %vm140, %v141, %v132
    %v143 = vsel %vm136, %v139, %v142
    %v144 = vsel %vm133, nan, %v143
    %v146 = vlaneseq
    %v147 = vshrl.u32 %v146, 7
    %v148 = vsub.s32 0, %v147
    %v149 = vrot.slane %v27, %v148
    %v151 = vmul.f32 %v149, %v144
    %152 = vst [vmem:[#allocation2] sm:$0xff] %v151
    // Predicated region
    $region10: #{tpu_custom_call.1} parent=1 // pred_check
      _
    $region11: #{tpu_custom_call.1} parent=1 // pred_check_branch
      %154 = sbr.rel (0) target = $region13
    $region12: #{tpu_custom_call.1} parent=1 // pred_region
      %s156 = ssub.s32 128, 128
      %157 = vsyncadd [#allocation3], %s156
      %s159 = sshll.u32 [#allocation2], 4
      %s160 = int_to_ptr.vmem [resolvable:$true] %s159
      %162 = dma.vmem_to_hbm [thread:$0]  %s160, 128, %s2, [#allocation3]
    $region13: #{tpu_custom_call.1} parent=1 // pred_fallthru
      _
    // Predicated region
    $region14: #{tpu_custom_call.1} parent=1 // pred_check
      _
    $region15: #{tpu_custom_call.1} parent=1 // pred_check_branch
      %164 = sbr.rel (0) target = $region17
    $region16: #{tpu_custom_call.1} parent=1 // pred_region
      %165 = dma.done [#allocation3], 128
    $region17: #{tpu_custom_call.1} parent=1 // pred_fallthru
      _
    %166 = vsyncpa [#allocation3], 1

</llo_original>
